<compile_context>
chip_gen: v7x
topology: tpu7x:2x2x1
jax: 0.10.0
libtpu: 0.0.40
codegen_flags: <defaults>
</compile_context>

<pallas_src>
import functools

import jax
import jax.numpy as jnp
from jax.experimental import pallas as pl
from jax.experimental.pallas import tpu as pltpu

IN_FEATURES = 768
HIDDEN = 100
OUT = 3
HIDDEN_PAD = 128   # pad 100 -> 128 (lane alignment)
OUT_PAD = 128      # pad 3   -> 128 (lane-dense unmasked stores)

# Default batch tile: 512 rows of bf16 activations = 768 KiB per buffer, so
# double-buffered x + resident weights fit comfortably in VMEM on v5e/v6e/v7x.
DEFAULT_BLOCK_B = 512


def _round_up(v, m):
    return ((v + m - 1) // m) * m


def _mlp_kernel(x_ref, w1_ref, b1_ref, w2_ref, b2_ref, o_ref):
    # x: [TB, 768] bf16, w1: [768, 128] bf16, b1: [1, 128] f32,
    # w2: [128, 128] bf16, b2: [1, 128] f32, o: [TB, 128] f32
    h = jnp.dot(x_ref[...], w1_ref[...], preferred_element_type=jnp.float32)
    h = jnp.maximum(h + b1_ref[...], 0.0)          # bias + ReLU in f32
    # Dropout(p=0.1) is identity in eval mode.
    logits = jnp.dot(h.astype(w2_ref.dtype), w2_ref[...],
                     preferred_element_type=jnp.float32)
    o_ref[...] = (logits + b2_ref[...]).astype(o_ref.dtype)


def pad_params(params):
    """One-time parameter prep: zero-pad to 128 lanes and cast weights to bf16.

    Call this once at init/load time; pass the result to classifier_forward.
    Zero padding is sound: hidden cols 100-127 give ReLU(0)=0 and w2 rows
    100-127 are zero, so padded lanes never touch the 3 real logits.
    """
    w1, b1, w2, b2 = params  # w1:[768,100], b1:[100], w2:[100,3], b2:[3]
    w1p = jnp.zeros((IN_FEATURES, HIDDEN_PAD), jnp.bfloat16)
    w1p = w1p.at[:, :HIDDEN].set(w1.astype(jnp.bfloat16))
    b1p = jnp.zeros((1, HIDDEN_PAD), jnp.float32).at[0, :HIDDEN].set(b1)
    w2p = jnp.zeros((HIDDEN_PAD, OUT_PAD), jnp.bfloat16)
    w2p = w2p.at[:HIDDEN, :OUT].set(w2.astype(jnp.bfloat16))
    b2p = jnp.zeros((1, OUT_PAD), jnp.float32).at[0, :OUT].set(b2)
    return (w1p, b1p, w2p, b2p)


@functools.partial(jax.jit, static_argnames=("block_b",))
def classifier_forward(x_nchw, padded_params, *, block_b=DEFAULT_BLOCK_B):
    """x_nchw: [N, C, H, W] with C*H*W == 768. Returns logits [N, 3] (f32)."""
    w1p, b1p, w2p, b2p = padded_params
    n = x_nchw.shape[0]

    x_flat = x_nchw.reshape(n, -1)                      # nn.Flatten (row-major)
    assert x_flat.shape[1] == IN_FEATURES
    x_flat = x_flat.astype(jnp.bfloat16)                # bf16 matmul inputs

    # Batch tile: multiple of 8 sublanes, no bigger than needed.
    tb = min(block_b, _round_up(n, 8))
    n_pad = _round_up(n, tb)
    if n_pad != n:
        x_flat = jnp.pad(x_flat, ((0, n_pad - n), (0, 0)))

    out_padded = pl.pallas_call(
        _mlp_kernel,
        out_shape=jax.ShapeDtypeStruct((n_pad, OUT_PAD), jnp.float32),
        grid_spec=pl.GridSpec(
            grid=(n_pad // tb,),
            in_specs=[
                pl.BlockSpec((tb, IN_FEATURES), lambda i: (i, 0)),       # x tile
                pl.BlockSpec((IN_FEATURES, HIDDEN_PAD), lambda i: (0, 0)),  # w1 (resident)
                pl.BlockSpec((1, HIDDEN_PAD), lambda i: (0, 0)),         # b1 (resident)
                pl.BlockSpec((HIDDEN_PAD, OUT_PAD), lambda i: (0, 0)),   # w2 (resident)
                pl.BlockSpec((1, OUT_PAD), lambda i: (0, 0)),            # b2 (resident)
            ],
            out_specs=pl.BlockSpec((tb, OUT_PAD), lambda i: (i, 0)),
        ),
        compiler_params=pltpu.CompilerParams(
            dimension_semantics=("parallel",),
            vmem_limit_bytes=64 << 20,
        ),
    )(x_flat, w1p, b1p, w2p, b2p)

    return out_padded[:n, :OUT]


def init_params(key):
    """Deterministic init matching nn.Linear's U(-1/sqrt(fan_in), 1/sqrt(fan_in))."""
    k1, k2, k3, k4 = jax.random.split(key, 4)
    bound1 = 1.0 / jnp.sqrt(float(IN_FEATURES))
    bound2 = 1.0 / jnp.sqrt(float(HIDDEN))
    w1 = jax.random.uniform(k1, (IN_FEATURES, HIDDEN), jnp.float32, -bound1, bound1)
    b1 = jax.random.uniform(k2, (HIDDEN,), jnp.float32, -bound1, bound1)
    w2 = jax.random.uniform(k3, (HIDDEN, OUT), jnp.float32, -bound2, bound2)
    b2 = jax.random.uniform(k4, (OUT,), jnp.float32, -bound2, bound2)
    return (w1, b1, w2, b2)


if __name__ == "__main__":
    key = jax.random.PRNGKey(0)
    pkey, xkey = jax.random.split(key)
    params = init_params(pkey)
    padded_params = pad_params(params)   # one-time padding, hoisted out of forward

    # Example input: batch=2, channels=3, spatial=16x16 -> flattens to 768.
    x = jax.random.normal(xkey, (2, 3, 16, 16), jnp.float32)

    logits = classifier_forward(x, padded_params)
    jax.block_until_ready(logits)

    # Reference check in plain JAX (f32); bf16 matmuls -> looser tolerance.
    w1, b1, w2, b2 = params
    ref = jnp.maximum(x.reshape(2, -1) @ w1 + b1, 0.0) @ w2 + b2
    assert logits.shape == (2, 3)
    assert jnp.allclose(logits, ref, atol=2e-2, rtol=2e-2), (logits, ref)

    print("KERNEL_OK")
</pallas_src>

<mosaic_0001>
module attributes {stable_mosaic.version = 11 : i64} {
  func.func @_mlp_kernel(%arg0: i32, %arg1: memref<8x768xbf16, #tpu.memory_space<vmem>>, %arg2: memref<768x128xbf16, #tpu.memory_space<vmem>>, %arg3: memref<1x128xf32, #tpu.memory_space<vmem>>, %arg4: memref<128x128xbf16, #tpu.memory_space<vmem>>, %arg5: memref<1x128xf32, #tpu.memory_space<vmem>>, %arg6: memref<8x128xf32, #tpu.memory_space<vmem>>) attributes {dimension_semantics = [#tpu.dimension_semantics<parallel>], iteration_bounds = array<i64: 1>, scalar_prefetch = 0 : i64, scratch_operands = 0 : i64, tpu.core_type = #tpu.core_type<tc>, window_params = [{transform_indices = @transform_0, window_bounds = array<i64: 8, 768>}, {pipeline_mode = #tpu.pipeline_mode<synchronous>, transform_indices = @transform_1, window_bounds = array<i64: 768, 128>}, {pipeline_mode = #tpu.pipeline_mode<synchronous>, transform_indices = @transform_2, window_bounds = array<i64: 1, 128>}, {pipeline_mode = #tpu.pipeline_mode<synchronous>, transform_indices = @transform_3, window_bounds = array<i64: 128, 128>}, {pipeline_mode = #tpu.pipeline_mode<synchronous>, transform_indices = @transform_4, window_bounds = array<i64: 1, 128>}, {transform_indices = @transform_5, window_bounds = array<i64: 8, 128>}]} {
    %c0 = arith.constant 0 : index
    %c0_0 = arith.constant 0 : index
    %0 = vector.load %arg1[%c0, %c0_0] : memref<8x768xbf16, #tpu.memory_space<vmem>>, vector<8x768xbf16>
    %c0_1 = arith.constant 0 : index
    %c0_2 = arith.constant 0 : index
    %1 = vector.load %arg2[%c0_1, %c0_2] : memref<768x128xbf16, #tpu.memory_space<vmem>>, vector<768x128xbf16>
    %cst = arith.constant dense<0.000000e+00> : vector<8x128xf32>
    %2 = tpu.matmul %0, %1, %cst {dimension_numbers = #tpu.dot_dimension_numbers<[1], [0], [0], [1], [0, 0, 1, 1], [], []>} : vector<8x768xbf16>, vector<768x128xbf16>, vector<8x128xf32> -> vector<8x128xf32>
    %c0_3 = arith.constant 0 : index
    %c0_4 = arith.constant 0 : index
    %3 = vector.load %arg3[%c0_3, %c0_4] : memref<1x128xf32, #tpu.memory_space<vmem>>, vector<1x128xf32>
    %4 = vector.broadcast %3 : vector<1x128xf32> to vector<8x128xf32>
    %5 = arith.addf %2, %4 : vector<8x128xf32>
    %cst_5 = arith.constant 0.000000e+00 : f32
    %6 = vector.broadcast %cst_5 : f32 to vector<8x128xf32>
    %7 = arith.maximumf %5, %6 : vector<8x128xf32>
    %8 = arith.truncf %7 : vector<8x128xf32> to vector<8x128xbf16>
    %c0_6 = arith.constant 0 : index
    %c0_7 = arith.constant 0 : index
    %9 = vector.load %arg4[%c0_6, %c0_7] : memref<128x128xbf16, #tpu.memory_space<vmem>>, vector<128x128xbf16>
    %cst_8 = arith.constant dense<0.000000e+00> : vector<8x128xf32>
    %10 = tpu.matmul %8, %9, %cst_8 {dimension_numbers = #tpu.dot_dimension_numbers<[1], [0], [0], [1], [0, 0, 1, 1], [], []>} : vector<8x128xbf16>, vector<128x128xbf16>, vector<8x128xf32> -> vector<8x128xf32>
    %c0_9 = arith.constant 0 : index
    %c0_10 = arith.constant 0 : index
    %11 = vector.load %arg5[%c0_9, %c0_10] : memref<1x128xf32, #tpu.memory_space<vmem>>, vector<1x128xf32>
    %12 = vector.broadcast %11 : vector<1x128xf32> to vector<8x128xf32>
    %13 = arith.addf %10, %12 : vector<8x128xf32>
    %c0_11 = arith.constant 0 : index
    %c0_12 = arith.constant 0 : index
    %14 = vector.load %arg6[%c0_11, %c0_12] : memref<8x128xf32, #tpu.memory_space<vmem>>, vector<8x128xf32>
    tpu.vector_store %arg6[%c0_11, %c0_12], %13 {strides = array<i32>} : memref<8x128xf32, #tpu.memory_space<vmem>>, vector<8x128xf32>,
    return
  }
  func.func @transform_0(%arg0: i32) -> (i32, i32) {
    %c0_i32 = arith.constant 0 : i32
    %c0_i32_0 = arith.constant 0 : i32
    return %arg0, %c0_i32 : i32, i32
  }
  func.func @transform_1(%arg0: i32) -> (i32, i32) {
    %c0_i32 = arith.constant 0 : i32
    %c0_i32_0 = arith.constant 0 : i32
    %c0_i32_1 = arith.constant 0 : i32
    return %c0_i32, %c0_i32_0 : i32, i32
  }
  func.func @transform_2(%arg0: i32) -> (i32, i32) {
    %c0_i32 = arith.constant 0 : i32
    %c0_i32_0 = arith.constant 0 : i32
    %c0_i32_1 = arith.constant 0 : i32
    return %c0_i32, %c0_i32_0 : i32, i32
  }
  func.func @transform_3(%arg0: i32) -> (i32, i32) {
    %c0_i32 = arith.constant 0 : i32
    %c0_i32_0 = arith.constant 0 : i32
    %c0_i32_1 = arith.constant 0 : i32
    return %c0_i32, %c0_i32_0 : i32, i32
  }
  func.func @transform_4(%arg0: i32) -> (i32, i32) {
    %c0_i32 = arith.constant 0 : i32
    %c0_i32_0 = arith.constant 0 : i32
    %c0_i32_1 = arith.constant 0 : i32
    return %c0_i32, %c0_i32_0 : i32, i32
  }
  func.func @transform_5(%arg0: i32) -> (i32, i32) {
    %c0_i32 = arith.constant 0 : i32
    %c0_i32_0 = arith.constant 0 : i32
    return %arg0, %c0_i32 : i32, i32
  }
}

</mosaic_0001>

<llo_original>
// kernel: classifier_forward.1
$region0: #{classifier_forward.1}
  #allocation0 [shape = 'u32[]', space=smem, size = 0x4, offset = 0x4, fixed_abs, tag = 'smem constant byte address 0x4 - core index']
  #allocation1 [shape = 'u32[144,128]{1,0:T(1,128)}', space=vmem, size = 0x12000, scoped, tag = 'internal scratch']
  %s0 = inlined_call_operand.hbm [shape: bf16[8,768], index: 0, kind: input, shape index: {}]
  %s1 = inlined_call_operand.hbm [shape: bf16[768,128], index: 1, kind: input, shape index: {}]
  %s2 = inlined_call_operand.hbm [shape: f32[1,128], index: 2, kind: input, shape index: {}]
  %s3 = inlined_call_operand.hbm [shape: bf16[128,128], index: 3, kind: input, shape index: {}]
  %s4 = inlined_call_operand.hbm [shape: f32[1,128], index: 4, kind: input, shape index: {}]
  %s5 = inlined_call_operand.hbm [shape: f32[8,128], index: 5, kind: output, shape index: {}]
  %s6 = sld [smem:[#allocation0]]
  $region50: #{classifier_forward.1} parent=0
    _
  %s8 = ssub.s32 1, %s6
  %s9 = scalar_select 0, %s8, %s6
  $region1: #{classifier_forward.1} parent=0
    #allocation2 [shape = 'u8[12288]{0}', space=vmem, size = 0x3000, scoped, tag = 'input window, operand 0, single buffered']
    #allocation3 [shape = 's32[1]{0}', space=sflag, size = 0x4, scoped, tag = 'scoped memory for classifier_forward.1']
    #allocation4 [shape = 's32[1]{0}', space=sflag, size = 0x4, scoped, tag = 'scoped memory for classifier_forward.1']
    #allocation5 [shape = 'u8[196608]{0}', space=vmem, size = 0x30000, scoped, tag = 'input window, operand 1, single buffered']
    #allocation6 [shape = 's32[1]{0}', space=sflag, size = 0x4, scoped, tag = 'scoped memory for classifier_forward.1']
    #allocation7 [shape = 'u8[512]{0}', space=vmem, size = 0x400, scoped, tag = 'input window, operand 2, single buffered']
    #allocation8 [shape = 'u8[32768]{0}', space=vmem, size = 0x8000, scoped, tag = 'input window, operand 3, single buffered']
    #allocation9 [shape = 's32[1]{0}', space=sflag, size = 0x4, scoped, tag = 'scoped memory for classifier_forward.1']
    #allocation10 [shape = 'u8[512]{0}', space=vmem, size = 0x400, scoped, tag = 'input window, operand 4, single buffered']
    #allocation11 [shape = 'u8[4096]{0}', space=vmem, size = 0x1000, scoped, tag = 'output window, operand 0, single buffered']
    %10 = vsyncpa [#allocation3], 0
    %11 = vsyncpa [#allocation6], 0
    %12 = vsyncpa [#allocation9], 0
    %13 = vsyncpa [#allocation4], 0
    // Predicated region
    $region2: #{classifier_forward.1} parent=1 // pred_check
      _
    $region3: #{classifier_forward.1} parent=1 // pred_check_branch
      %15 = sbr.rel (0) target = $region5
    $region4: #{classifier_forward.1} parent=1 // pred_region
      %s17 = ssub.s32 384, 384
      %18 = vsyncadd [#allocation3], %s17
      %s20 = sshll.u32 [#allocation2], 4
      %s21 = int_to_ptr.vmem [resolvable:$true] %s20
      %23 = dma.hbm_to_vmem [thread:$0]  %s0, 384, %s21, [#allocation3]
    $region5: #{classifier_forward.1} parent=1 // pred_fallthru
      _
    // Predicated region
    $region6: #{classifier_forward.1} parent=1 // pred_check
      _
    $region7: #{classifier_forward.1} parent=1 // pred_check_branch
      %25 = sbr.rel (0) target = $region9
    $region8: #{classifier_forward.1} parent=1 // pred_region
      %s27 = ssub.s32 6144, 6144
      %28 = vsyncadd [#allocation6], %s27
      %s29 = sshll.u32 [#allocation5], 4
      %s30 = int_to_ptr.vmem [resolvable:$true] %s29
      %35 = dma.hbm_to_vmem [thread:$0]  %s1, 6144, %s30, [#allocation6], 64, 64, 4
    $region9: #{classifier_forward.1} parent=1 // pred_fallthru
      _
    // Predicated region
    $region10: #{classifier_forward.1} parent=1 // pred_check
      _
    $region11: #{classifier_forward.1} parent=1 // pred_check_branch
      %37 = sbr.rel (0) target = $region13
    $region12: #{classifier_forward.1} parent=1 // pred_region
      %s39 = ssub.s32 16, 16
      %40 = vsyncadd [#allocation6], %s39
      %s42 = sshll.u32 [#allocation7], 4
      %s43 = int_to_ptr.vmem [resolvable:$true] %s42
      %45 = dma.hbm_to_vmem [thread:$0]  %s2, 16, %s43, [#allocation6]
    $region13: #{classifier_forward.1} parent=1 // pred_fallthru
      _
    // Predicated region
    $region14: #{classifier_forward.1} parent=1 // pred_check
      _
    $region15: #{classifier_forward.1} parent=1 // pred_check_branch
      %47 = sbr.rel (0) target = $region17
    $region16: #{classifier_forward.1} parent=1 // pred_region
      %s49 = ssub.s32 1024, 1024
      %50 = vsyncadd [#allocation9], %s49
      %s51 = sshll.u32 [#allocation8], 4
      %s52 = int_to_ptr.vmem [resolvable:$true] %s51
      %57 = dma.hbm_to_vmem [thread:$0]  %s3, 1024, %s52, [#allocation9], 64, 64, 4
    $region17: #{classifier_forward.1} parent=1 // pred_fallthru
      _
    // Predicated region
    $region18: #{classifier_forward.1} parent=1 // pred_check
      _
    $region19: #{classifier_forward.1} parent=1 // pred_check_branch
      %59 = sbr.rel (0) target = $region21
    $region20: #{classifier_forward.1} parent=1 // pred_region
      %s61 = ssub.s32 16, 16
      %62 = vsyncadd [#allocation9], %s61
      %s64 = sshll.u32 [#allocation10], 4
      %s65 = int_to_ptr.vmem [resolvable:$true] %s64
      %67 = dma.hbm_to_vmem [thread:$0]  %s4, 16, %s65, [#allocation9]
    $region21: #{classifier_forward.1} parent=1 // pred_fallthru
      _
    // Predicated region
    $region22: #{classifier_forward.1} parent=1 // pred_check
      _
    $region23: #{classifier_forward.1} parent=1 // pred_check_branch
      %69 = sbr.rel (0) target = $region25
    $region24: #{classifier_forward.1} parent=1 // pred_region
      %70 = dma.done [#allocation3], 384
    $region25: #{classifier_forward.1} parent=1 // pred_fallthru
      _
    // Predicated region
    $region26: #{classifier_forward.1} parent=1 // pred_check
      _
    $region27: #{classifier_forward.1} parent=1 // pred_check_branch
      %72 = sbr.rel (0) target = $region29
    $region28: #{classifier_forward.1} parent=1 // pred_region
      %73 = dma.done [#allocation6], 6144
    $region29: #{classifier_forward.1} parent=1 // pred_fallthru
      _
    // Predicated region
    $region30: #{classifier_forward.1} parent=1 // pred_check
      _
    $region31: #{classifier_forward.1} parent=1 // pred_check_branch
      %75 = sbr.rel (0) target = $region33
    $region32: #{classifier_forward.1} parent=1 // pred_region
      %76 = dma.done [#allocation6], 16
    $region33: #{classifier_forward.1} parent=1 // pred_fallthru
      _
    // Predicated region
    $region34: #{classifier_forward.1} parent=1 // pred_check
      _
    $region35: #{classifier_forward.1} parent=1 // pred_check_branch
      %78 = sbr.rel (0) target = $region37
    $region36: #{classifier_forward.1} parent=1 // pred_region
      %79 = dma.done [#allocation9], 1024
    $region37: #{classifier_forward.1} parent=1 // pred_fallthru
      _
    // Predicated region
    $region38: #{classifier_forward.1} parent=1 // pred_check
      _
    $region39: #{classifier_forward.1} parent=1 // pred_check_branch
      %81 = sbr.rel (0) target = $region41
    $region40: #{classifier_forward.1} parent=1 // pred_region
      %82 = dma.done [#allocation9], 16
    $region41: #{classifier_forward.1} parent=1 // pred_fallthru
      _
    %v84 = vld [vmem:[#allocation2] sm:$0xff]
    %v85 = vld [vmem:[#allocation2 + $0x8] sm:$0xff]
    %v86 = vld [vmem:[#allocation2 + $0x10] sm:$0xff]
    %v87 = vld [vmem:[#allocation5] sm:$0xf]
    %v88 = vld [vmem:[#allocation5 + $0x4] sm:$0xf]
    %v89 = vld [vmem:[#allocation5 + $0x8] sm:$0xf]
    %v90 = vld [vmem:[#allocation5 + $0xc] sm:$0xf]
    %v91 = vld [vmem:[#allocation5 + $0x10] sm:$0xf]
    %v92 = vld [vmem:[#allocation5 + $0x14] sm:$0xf]
    %v93 = vld [vmem:[#allocation5 + $0x18] sm:$0xf]
    %v94 = vld [vmem:[#allocation5 + $0x1c] sm:$0xf]
    %v95 = vld [vmem:[#allocation5 + $0x20] sm:$0xf]
    %v96 = vld [vmem:[#allocation5 + $0x24] sm:$0xf]
    %v97 = vld [vmem:[#allocation5 + $0x28] sm:$0xf]
    %v98 = vld [vmem:[#allocation5 + $0x2c] sm:$0xf]
    %v99 = vld [vmem:[#allocation5 + $0x30] sm:$0xf]
    %v100 = vld [vmem:[#allocation5 + $0x34] sm:$0xf]
    %v101 = vld [vmem:[#allocation5 + $0x38] sm:$0xf]
    %v102 = vld [vmem:[#allocation5 + $0x3c] sm:$0xf]
    %v103 = vld [vmem:[#allocation5 + $0x40] sm:$0xf]
    %v104 = vld [vmem:[#allocation5 + $0x44] sm:$0xf]
    %v105 = vld [vmem:[#allocation5 + $0x48] sm:$0xf]
    %v106 = vld [vmem:[#allocation5 + $0x4c] sm:$0xf]
    %v107 = vld [vmem:[#allocation5 + $0x50] sm:$0xf]
    %v108 = vld [vmem:[#allocation5 + $0x54] sm:$0xf]
    %v109 = vld [vmem:[#allocation5 + $0x58] sm:$0xf]
    %v110 = vld [vmem:[#allocation5 + $0x5c] sm:$0xf]
    %v111 = vld [vmem:[#allocation5 + $0x60] sm:$0xf]
    %v112 = vld [vmem:[#allocation5 + $0x64] sm:$0xf]
    %v113 = vld [vmem:[#allocation5 + $0x68] sm:$0xf]
    %v114 = vld [vmem:[#allocation5 + $0x6c] sm:$0xf]
    %v115 = vld [vmem:[#allocation5 + $0x70] sm:$0xf]
    %v116 = vld [vmem:[#allocation5 + $0x74] sm:$0xf]
    %v117 = vld [vmem:[#allocation5 + $0x78] sm:$0xf]
    %v118 = vld [vmem:[#allocation5 + $0x7c] sm:$0xf]
    %v119 = vld [vmem:[#allocation5 + $0x80] sm:$0xf]
    %v120 = vld [vmem:[#allocation5 + $0x84] sm:$0xf]
    %v121 = vld [vmem:[#allocation5 + $0x88] sm:$0xf]
    %v122 = vld [vmem:[#allocation5 + $0x8c] sm:$0xf]
    %v123 = vld [vmem:[#allocation5 + $0x90] sm:$0xf]
    %v124 = vld [vmem:[#allocation5 + $0x94] sm:$0xf]
    %v125 = vld [vmem:[#allocation5 + $0x98] sm:$0xf]
    %v126 = vld [vmem:[#allocation5 + $0x9c] sm:$0xf]
    %v127 = vld [vmem:[#allocation5 + $0xa0] sm:$0xf]
    %v128 = vld [vmem:[#allocation5 + $0xa4] sm:$0xf]
    %v129 = vld [vmem:[#allocation5 + $0xa8] sm:$0xf]
    %v130 = vld [vmem:[#allocation5 + $0xac] sm:$0xf]
    %v131 = vld [vmem:[#allocation5 + $0xb0] sm:$0xf]
    %v132 = vld [vmem:[#allocation5 + $0xb4] sm:$0xf]
    %v133 = vld [vmem:[#allocation5 + $0xb8] sm:$0xf]
    %v134 = vld [vmem:[#allocation5 + $0xbc] sm:$0xf]
    %v135 = vld [vmem:[#allocation5 + $0xc0] sm:$0xf]
    %v136 = vld [vmem:[#allocation5 + $0xc4] sm:$0xf]
    %v137 = vld [vmem:[#allocation5 + $0xc8] sm:$0xf]
    %v138 = vld [vmem:[#allocation5 + $0xcc] sm:$0xf]
    %v139 = vld [vmem:[#allocation5 + $0xd0] sm:$0xf]
    %v140 = vld [vmem:[#allocation5 + $0xd4] sm:$0xf]
    %v141 = vld [vmem:[#allocation5 + $0xd8] sm:$0xf]
    %v142 = vld [vmem:[#allocation5 + $0xdc] sm:$0xf]
    %v143 = vld [vmem:[#allocation5 + $0xe0] sm:$0xf]
    %v144 = vld [vmem:[#allocation5 + $0xe4] sm:$0xf]
    %v145 = vld [vmem:[#allocation5 + $0xe8] sm:$0xf]
    %v146 = vld [vmem:[#allocation5 + $0xec] sm:$0xf]
    %v147 = vld [vmem:[#allocation5 + $0xf0] sm:$0xf]
    %v148 = vld [vmem:[#allocation5 + $0xf4] sm:$0xf]
    %v149 = vld [vmem:[#allocation5 + $0xf8] sm:$0xf]
    %v150 = vld [vmem:[#allocation5 + $0xfc] sm:$0xf]
    %v151 = vld [vmem:[#allocation5 + $0x100] sm:$0xf]
    %v152 = vld [vmem:[#allocation5 + $0x104] sm:$0xf]
    %v153 = vld [vmem:[#allocation5 + $0x108] sm:$0xf]
    %v154 = vld [vmem:[#allocation5 + $0x10c] sm:$0xf]
    %v155 = vld [vmem:[#allocation5 + $0x110] sm:$0xf]
    %v156 = vld [vmem:[#allocation5 + $0x114] sm:$0xf]
    %v157 = vld [vmem:[#allocation5 + $0x118] sm:$0xf]
    %v158 = vld [vmem:[#allocation5 + $0x11c] sm:$0xf]
    %v159 = vld [vmem:[#allocation5 + $0x120] sm:$0xf]
    %v160 = vld [vmem:[#allocation5 + $0x124] sm:$0xf]
    %v161 = vld [vmem:[#allocation5 + $0x128] sm:$0xf]
    %v162 = vld [vmem:[#allocation5 + $0x12c] sm:$0xf]
    %v163 = vld [vmem:[#allocation5 + $0x130] sm:$0xf]
    %v164 = vld [vmem:[#allocation5 + $0x134] sm:$0xf]
    %v165 = vld [vmem:[#allocation5 + $0x138] sm:$0xf]
    %v166 = vld [vmem:[#allocation5 + $0x13c] sm:$0xf]
    %v167 = vld [vmem:[#allocation5 + $0x140] sm:$0xf]
    %v168 = vld [vmem:[#allocation5 + $0x144] sm:$0xf]
    %v169 = vld [vmem:[#allocation5 + $0x148] sm:$0xf]
    %v170 = vld [vmem:[#allocation5 + $0x14c] sm:$0xf]
    %v171 = vld [vmem:[#allocation5 + $0x150] sm:$0xf]
    %v172 = vld [vmem:[#allocation5 + $0x154] sm:$0xf]
    %v173 = vld [vmem:[#allocation5 + $0x158] sm:$0xf]
    %v174 = vld [vmem:[#allocation5 + $0x15c] sm:$0xf]
    %v175 = vld [vmem:[#allocation5 + $0x160] sm:$0xf]
    %v176 = vld [vmem:[#allocation5 + $0x164] sm:$0xf]
    %v177 = vld [vmem:[#allocation5 + $0x168] sm:$0xf]
    %v178 = vld [vmem:[#allocation5 + $0x16c] sm:$0xf]
    %v179 = vld [vmem:[#allocation5 + $0x170] sm:$0xf]
    %v180 = vld [vmem:[#allocation5 + $0x174] sm:$0xf]
    %v181 = vld [vmem:[#allocation5 + $0x178] sm:$0xf]
    %v182 = vld [vmem:[#allocation5 + $0x17c] sm:$0xf]
    %v183 = vld [vmem:[#allocation7] sm:$0x1]
    %v185 = vlaneseq
    %v186 = vshrl.u32 %v185, 7
    %v187 = vsub.s32 0, %v186
    %v188 = vrot.slane %v183, %v187
    %v193 = vunpack.c.l.b16 %v84
    %v194 = vunpack.c.h.b16 %v84
    %v195 = vunpack.c.l.b16 %v85
    %v196 = vunpack.c.h.b16 %v85
    %v197 = vunpack.c.l.b16 %v86
    %v198 = vunpack.c.h.b16 %v86
    %v199 = vpack.c.b16 %v193, %v193
    %v200 = vpack.c.b16 %v194, %v194
    %v201 = vpack.c.b16 %v195, %v195
    %v202 = vpack.c.b16 %v196, %v196
    %v203 = vpack.c.b16 %v197, %v197
    %v204 = vpack.c.b16 %v198, %v198
    %v307 = vunpack.c.l.b16 %v87
    %v308 = vunpack.c.l.b16 %v88
    %v309 = vunpack.c.l.b16 %v89
    %v310 = vunpack.c.l.b16 %v90
    %v311 = vunpack.c.l.b16 %v91
    %v312 = vunpack.c.l.b16 %v92
    %v313 = vunpack.c.l.b16 %v93
    %v314 = vunpack.c.l.b16 %v94
    %v315 = vunpack.c.l.b16 %v95
    %v316 = vunpack.c.l.b16 %v96
    %v317 = vunpack.c.l.b16 %v97
    %v318 = vunpack.c.l.b16 %v98
    %v319 = vunpack.c.l.b16 %v99
    %v320 = vunpack.c.l.b16 %v100
    %v321 = vunpack.c.l.b16 %v101
    %v322 = vunpack.c.l.b16 %v102
    %v323 = vunpack.c.l.b16 %v103
    %v324 = vunpack.c.l.b16 %v104
    %v325 = vunpack.c.l.b16 %v105
    %v326 = vunpack.c.l.b16 %v106
    %v327 = vunpack.c.l.b16 %v107
    %v328 = vunpack.c.l.b16 %v108
    %v329 = vunpack.c.l.b16 %v109
    %v330 = vunpack.c.l.b16 %v110
    %v331 = vunpack.c.l.b16 %v111
    %v332 = vunpack.c.l.b16 %v112
    %v333 = vunpack.c.l.b16 %v113
    %v334 = vunpack.c.l.b16 %v114
    %v335 = vunpack.c.l.b16 %v115
    %v336 = vunpack.c.l.b16 %v116
    %v337 = vunpack.c.l.b16 %v117
    %v338 = vunpack.c.l.b16 %v118
    %v339 = vunpack.c.l.b16 %v119
    %v340 = vunpack.c.l.b16 %v120
    %v341 = vunpack.c.l.b16 %v121
    %v342 = vunpack.c.l.b16 %v122
    %v343 = vunpack.c.l.b16 %v123
    %v344 = vunpack.c.l.b16 %v124
    %v345 = vunpack.c.l.b16 %v125
    %v346 = vunpack.c.l.b16 %v126
    %v347 = vunpack.c.l.b16 %v127
    %v348 = vunpack.c.l.b16 %v128
    %v349 = vunpack.c.l.b16 %v129
    %v350 = vunpack.c.l.b16 %v130
    %v351 = vunpack.c.l.b16 %v131
    %v352 = vunpack.c.l.b16 %v132
    %v353 = vunpack.c.l.b16 %v133
    %v354 = vunpack.c.l.b16 %v134
    %v355 = vunpack.c.l.b16 %v135
    %v356 = vunpack.c.l.b16 %v136
    %v357 = vunpack.c.l.b16 %v137
    %v358 = vunpack.c.l.b16 %v138
    %v359 = vunpack.c.l.b16 %v139
    %v360 = vunpack.c.l.b16 %v140
    %v361 = vunpack.c.l.b16 %v141
    %v362 = vunpack.c.l.b16 %v142
    %v363 = vunpack.c.l.b16 %v143
    %v364 = vunpack.c.l.b16 %v144
    %v365 = vunpack.c.l.b16 %v145
    %v366 = vunpack.c.l.b16 %v146
    %v367 = vunpack.c.l.b16 %v147
    %v368 = vunpack.c.l.b16 %v148
    %v369 = vunpack.c.l.b16 %v149
    %v370 = vunpack.c.l.b16 %v150
    %v371 = vunpack.c.l.b16 %v151
    %v372 = vunpack.c.l.b16 %v152
    %v373 = vunpack.c.l.b16 %v153
    %v374 = vunpack.c.l.b16 %v154
    %v375 = vunpack.c.l.b16 %v155
    %v376 = vunpack.c.l.b16 %v156
    %v377 = vunpack.c.l.b16 %v157
    %v378 = vunpack.c.l.b16 %v158
    %v379 = vunpack.c.l.b16 %v159
    %v380 = vunpack.c.l.b16 %v160
    %v381 = vunpack.c.l.b16 %v161
    %v382 = vunpack.c.l.b16 %v162
    %v383 = vunpack.c.l.b16 %v163
    %v384 = vunpack.c.l.b16 %v164
    %v385 = vunpack.c.l.b16 %v165
    %v386 = vunpack.c.l.b16 %v166
    %v387 = vunpack.c.l.b16 %v167
    %v388 = vunpack.c.l.b16 %v168
    %v389 = vunpack.c.l.b16 %v169
    %v390 = vunpack.c.l.b16 %v170
    %v391 = vunpack.c.l.b16 %v171
    %v392 = vunpack.c.l.b16 %v172
    %v393 = vunpack.c.l.b16 %v173
    %v394 = vunpack.c.l.b16 %v174
    %v395 = vunpack.c.l.b16 %v175
    %v396 = vunpack.c.l.b16 %v176
    %v397 = vunpack.c.l.b16 %v177
    %v398 = vunpack.c.l.b16 %v178
    %v399 = vunpack.c.l.b16 %v179
    %v400 = vunpack.c.l.b16 %v180
    %v401 = vunpack.c.l.b16 %v181
    %v402 = vunpack.c.l.b16 %v182
    %v403 = vpack.c.b16 %v308, %v307
    %v404 = vpack.c.b16 %v310, %v309
    %v405 = vpack.c.b16 %v312, %v311
    %v406 = vpack.c.b16 %v314, %v313
    %v407 = vpack.c.b16 %v316, %v315
    %v408 = vpack.c.b16 %v318, %v317
    %v409 = vpack.c.b16 %v320, %v319
    %v410 = vpack.c.b16 %v322, %v321
    %v411 = vpack.c.b16 %v324, %v323
    %v412 = vpack.c.b16 %v326, %v325
    %v413 = vpack.c.b16 %v328, %v327
    %v414 = vpack.c.b16 %v330, %v329
    %v415 = vpack.c.b16 %v332, %v331
    %v416 = vpack.c.b16 %v334, %v333
    %v417 = vpack.c.b16 %v336, %v335
    %v418 = vpack.c.b16 %v338, %v337
    %v419 = vpack.c.b16 %v340, %v339
    %v420 = vpack.c.b16 %v342, %v341
    %v421 = vpack.c.b16 %v344, %v343
    %v422 = vpack.c.b16 %v346, %v345
    %v423 = vpack.c.b16 %v348, %v347
    %v424 = vpack.c.b16 %v350, %v349
    %v425 = vpack.c.b16 %v352, %v351
    %v426 = vpack.c.b16 %v354, %v353
    %v427 = vpack.c.b16 %v356, %v355
    %v428 = vpack.c.b16 %v358, %v357
    %v429 = vpack.c.b16 %v360, %v359
    %v430 = vpack.c.b16 %v362, %v361
    %v431 = vpack.c.b16 %v364, %v363
    %v432 = vpack.c.b16 %v366, %v365
    %v433 = vpack.c.b16 %v368, %v367
    %v434 = vpack.c.b16 %v370, %v369
    %v435 = vpack.c.b16 %v372, %v371
    %v436 = vpack.c.b16 %v374, %v373
    %v437 = vpack.c.b16 %v376, %v375
    %v438 = vpack.c.b16 %v378, %v377
    %v439 = vpack.c.b16 %v380, %v379
    %v440 = vpack.c.b16 %v382, %v381
    %v441 = vpack.c.b16 %v384, %v383
    %v442 = vpack.c.b16 %v386, %v385
    %v443 = vpack.c.b16 %v388, %v387
    %v444 = vpack.c.b16 %v390, %v389
    %v445 = vpack.c.b16 %v392, %v391
    %v446 = vpack.c.b16 %v394, %v393
    %v447 = vpack.c.b16 %v396, %v395
    %v448 = vpack.c.b16 %v398, %v397
    %v449 = vpack.c.b16 %v400, %v399
    %v450 = vpack.c.b16 %v402, %v401
    %499 = vmatprep.subr.bf16.mxu0 0
    %500 = vmatpush1.bf16.msra.mxu0 %v403
    %501 = vmatprep.subr.bf16.mxu0 0
    %502 = vmatpush1.bf16.msra.mxu0 %v404
    %503 = vmatprep.subr.bf16.mxu0 0
    %504 = vmatpush1.bf16.msra.mxu0 %v405
    %505 = vmatprep.subr.bf16.mxu0 0
    %506 = vmatpush1.bf16.msra.mxu0 %v406
    %507 = vmatprep.subr.bf16.mxu0 0
    %508 = vmatpush1.bf16.msra.mxu0 %v407
    %509 = vmatprep.subr.bf16.mxu0 0
    %510 = vmatpush1.bf16.msra.mxu0 %v408
    %511 = vmatprep.subr.bf16.mxu0 0
    %512 = vmatpush1.bf16.msra.mxu0 %v409
    %513 = vmatprep.subr.bf16.mxu0 0
    %514 = vmatpush1.bf16.msra.mxu0 %v410
    %515 = vmatprep.subr.bf16.mxu0 0
    %516 = vmatpush1.bf16.msra.mxu0 %v411
    %517 = vmatprep.subr.bf16.mxu0 0
    %518 = vmatpush1.bf16.msra.mxu0 %v412
    %519 = vmatprep.subr.bf16.mxu0 0
    %520 = vmatpush1.bf16.msra.mxu0 %v413
    %521 = vmatprep.subr.bf16.mxu0 0
    %522 = vmatpush1.bf16.msra.mxu0 %v414
    %523 = vmatprep.subr.bf16.mxu0 0
    %524 = vmatpush1.bf16.msra.mxu0 %v415
    %525 = vmatprep.subr.bf16.mxu0 0
    %526 = vmatpush1.bf16.msra.mxu0 %v416
    %527 = vmatprep.subr.bf16.mxu0 0
    %528 = vmatpush1.bf16.msra.mxu0 %v417
    %529 = vmatprep.subr.bf16.mxu0 0
    %530 = vmatpush1.bf16.msra.mxu0 %v418
    %531 = vmatprep.mubr.bf16.mxu0 %v200
    %532 = vmatmul.mubr.bf16.gmra.mrb[0].mxu0 %v199
    %v533 = vpop.f32.mrb[0].mxu0
    %v534 = vadd.f32 %v188, %v533
    %v535 = vpop.f32.mrb[0].mxu0
    %v536 = vpop.f32.mrb[0].mxu0
    %v537 = vpop.f32.mrb[0].mxu0
    %538 = vdwg.mxu0
    %539 = vmatprep.subr.bf16.mxu0 0
    %540 = vmatpush1.bf16.msra.mxu0 %v419
    %541 = vmatprep.subr.bf16.mxu0 0
    %542 = vmatpush1.bf16.msra.mxu0 %v420
    %543 = vmatprep.subr.bf16.mxu0 0
    %544 = vmatpush1.bf16.msra.mxu0 %v421
    %545 = vmatprep.subr.bf16.mxu0 0
    %546 = vmatpush1.bf16.msra.mxu0 %v422
    %547 = vmatprep.subr.bf16.mxu0 0
    %548 = vmatpush1.bf16.msra.mxu0 %v423
    %549 = vmatprep.subr.bf16.mxu0 0
    %550 = vmatpush1.bf16.msra.mxu0 %v424
    %551 = vmatprep.subr.bf16.mxu0 0
    %552 = vmatpush1.bf16.msra.mxu0 %v425
    %553 = vmatprep.subr.bf16.mxu0 0
    %554 = vmatpush1.bf16.msra.mxu0 %v426
    %555 = vmatprep.subr.bf16.mxu0 0
    %556 = vmatpush1.bf16.msra.mxu0 %v427
    %557 = vmatprep.subr.bf16.mxu0 0
    %558 = vmatpush1.bf16.msra.mxu0 %v428
    %559 = vmatprep.subr.bf16.mxu0 0
    %560 = vmatpush1.bf16.msra.mxu0 %v429
    %561 = vmatprep.subr.bf16.mxu0 0
    %562 = vmatpush1.bf16.msra.mxu0 %v430
    %563 = vmatprep.subr.bf16.mxu0 0
    %564 = vmatpush1.bf16.msra.mxu0 %v431
    %565 = vmatprep.subr.bf16.mxu0 0
    %566 = vmatpush1.bf16.msra.mxu0 %v432
    %567 = vmatprep.subr.bf16.mxu0 0
    %568 = vmatpush1.bf16.msra.mxu0 %v433
    %569 = vmatprep.subr.bf16.mxu0 0
    %570 = vmatpush1.bf16.msra.mxu0 %v434
    %571 = vmatprep.mubr.bf16.mxu0 %v202
    %572 = vmatmul.mubr.bf16.gmra.mrb[0].mxu0 %v201
    %v573 = vpop.f32.mrb[0].mxu0
    %v574 = vadd.f32 %v534, %v573
    %v575 = vpop.f32.mrb[0].mxu0
    %v576 = vpop.f32.mrb[0].mxu0
    %v577 = vpop.f32.mrb[0].mxu0
    %578 = vdwg.mxu0
    %579 = vmatprep.subr.bf16.mxu0 0
    %580 = vmatpush1.bf16.msra.mxu0 %v435
    %581 = vmatprep.subr.bf16.mxu0 0
    %582 = vmatpush1.bf16.msra.mxu0 %v436
    %583 = vmatprep.subr.bf16.mxu0 0
    %584 = vmatpush1.bf16.msra.mxu0 %v437
    %585 = vmatprep.subr.bf16.mxu0 0
    %586 = vmatpush1.bf16.msra.mxu0 %v438
    %587 = vmatprep.subr.bf16.mxu0 0
    %588 = vmatpush1.bf16.msra.mxu0 %v439
    %589 = vmatprep.subr.bf16.mxu0 0
    %590 = vmatpush1.bf16.msra.mxu0 %v440
    %591 = vmatprep.subr.bf16.mxu0 0
    %592 = vmatpush1.bf16.msra.mxu0 %v441
    %593 = vmatprep.subr.bf16.mxu0 0
    %594 = vmatpush1.bf16.msra.mxu0 %v442
    %595 = vmatprep.subr.bf16.mxu0 0
    %596 = vmatpush1.bf16.msra.mxu0 %v443
    %597 = vmatprep.subr.bf16.mxu0 0
    %598 = vmatpush1.bf16.msra.mxu0 %v444
    %599 = vmatprep.subr.bf16.mxu0 0
    %600 = vmatpush1.bf16.msra.mxu0 %v445
    %601 = vmatprep.subr.bf16.mxu0 0
    %602 = vmatpush1.bf16.msra.mxu0 %v446
    %603 = vmatprep.subr.bf16.mxu0 0
    %604 = vmatpush1.bf16.msra.mxu0 %v447
    %605 = vmatprep.subr.bf16.mxu0 0
    %606 = vmatpush1.bf16.msra.mxu0 %v448
    %607 = vmatprep.subr.bf16.mxu0 0
    %608 = vmatpush1.bf16.msra.mxu0 %v449
    %609 = vmatprep.subr.bf16.mxu0 0
    %610 = vmatpush1.bf16.msra.mxu0 %v450
    %611 = vmatprep.mubr.bf16.mxu0 %v204
    %612 = vmatmul.mubr.bf16.gmra.mrb[0].mxu0 %v203
    %v613 = vpop.f32.mrb[0].mxu0
    %v614 = vadd.f32 %v574, %v613
    %v615 = vpop.f32.mrb[0].mxu0
    %v616 = vpop.f32.mrb[0].mxu0
    %v617 = vpop.f32.mrb[0].mxu0
    %618 = vdwg.mxu0
    %v619 = vmax.f32 %v614, 0.0
    %v620 = vpack.c.bf16 %v619, %v619
    %v621 = vld [vmem:[#allocation8] sm:$0xf]
    %v622 = vld [vmem:[#allocation8 + $0x4] sm:$0xf]
    %v623 = vld [vmem:[#allocation8 + $0x8] sm:$0xf]
    %v624 = vld [vmem:[#allocation8 + $0xc] sm:$0xf]
    %v625 = vld [vmem:[#allocation8 + $0x10] sm:$0xf]
    %v626 = vld [vmem:[#allocation8 + $0x14] sm:$0xf]
    %v627 = vld [vmem:[#allocation8 + $0x18] sm:$0xf]
    %v628 = vld [vmem:[#allocation8 + $0x1c] sm:$0xf]
    %v629 = vld [vmem:[#allocation8 + $0x20] sm:$0xf]
    %v630 = vld [vmem:[#allocation8 + $0x24] sm:$0xf]
    %v631 = vld [vmem:[#allocation8 + $0x28] sm:$0xf]
    %v632 = vld [vmem:[#allocation8 + $0x2c] sm:$0xf]
    %v633 = vld [vmem:[#allocation8 + $0x30] sm:$0xf]
    %v634 = vld [vmem:[#allocation8 + $0x34] sm:$0xf]
    %v635 = vld [vmem:[#allocation8 + $0x38] sm:$0xf]
    %v636 = vld [vmem:[#allocation8 + $0x3c] sm:$0xf]
    %v637 = vld [vmem:[#allocation10] sm:$0x1]
    %v639 = vlaneseq
    %v640 = vshrl.u32 %v639, 7
    %v641 = vsub.s32 0, %v640
    %v642 = vrot.slane %v637, %v641
    %v660 = vunpack.c.l.b16 %v621
    %v661 = vunpack.c.l.b16 %v622
    %v662 = vunpack.c.l.b16 %v623
    %v663 = vunpack.c.l.b16 %v624
    %v664 = vunpack.c.l.b16 %v625
    %v665 = vunpack.c.l.b16 %v626
    %v666 = vunpack.c.l.b16 %v627
    %v667 = vunpack.c.l.b16 %v628
    %v668 = vunpack.c.l.b16 %v629
    %v669 = vunpack.c.l.b16 %v630
    %v670 = vunpack.c.l.b16 %v631
    %v671 = vunpack.c.l.b16 %v632
    %v672 = vunpack.c.l.b16 %v633
    %v673 = vunpack.c.l.b16 %v634
    %v674 = vunpack.c.l.b16 %v635
    %v675 = vunpack.c.l.b16 %v636
    %v676 = vpack.c.b16 %v661, %v660
    %v677 = vpack.c.b16 %v663, %v662
    %v678 = vpack.c.b16 %v665, %v664
    %v679 = vpack.c.b16 %v667, %v666
    %v680 = vpack.c.b16 %v669, %v668
    %v681 = vpack.c.b16 %v671, %v670
    %v682 = vpack.c.b16 %v673, %v672
    %v683 = vpack.c.b16 %v675, %v674
    %692 = vmatprep.subr.bf16.mxu0 0
    %693 = vmatpush1.bf16.msra.mxu0 %v676
    %694 = vmatprep.subr.bf16.mxu0 0
    %695 = vmatpush1.bf16.msra.mxu0 %v677
    %696 = vmatprep.subr.bf16.mxu0 0
    %697 = vmatpush1.bf16.msra.mxu0 %v678
    %698 = vmatprep.subr.bf16.mxu0 0
    %699 = vmatpush1.bf16.msra.mxu0 %v679
    %700 = vmatprep.subr.bf16.mxu0 0
    %701 = vmatpush1.bf16.msra.mxu0 %v680
    %702 = vmatprep.subr.bf16.mxu0 0
    %703 = vmatpush1.bf16.msra.mxu0 %v681
    %704 = vmatprep.subr.bf16.mxu0 0
    %705 = vmatpush1.bf16.msra.mxu0 %v682
    %706 = vmatprep.subr.bf16.mxu0 0
    %707 = vmatpush1.bf16.msra.mxu0 %v683
    %708 = vmatprep.subr.bf16.mxu0 0
    %709 = vmatpush1.bf16.msra.mxu0 0
    %710 = vmatprep.subr.bf16.mxu0 0
    %711 = vmatpush1.bf16.msra.mxu0 0
    %712 = vmatprep.subr.bf16.mxu0 0
    %713 = vmatpush1.bf16.msra.mxu0 0
    %714 = vmatprep.subr.bf16.mxu0 0
    %715 = vmatpush1.bf16.msra.mxu0 0
    %716 = vmatprep.subr.bf16.mxu0 0
    %717 = vmatpush1.bf16.msra.mxu0 0
    %718 = vmatprep.subr.bf16.mxu0 0
    %719 = vmatpush1.bf16.msra.mxu0 0
    %720 = vmatprep.subr.bf16.mxu0 0
    %721 = vmatpush1.bf16.msra.mxu0 0
    %722 = vmatprep.subr.bf16.mxu0 0
    %723 = vmatpush1.bf16.msra.mxu0 0
    %724 = vmatprep.mubr.bf16.mxu0 0
    %725 = vmatmul.mubr.bf16.gmra.mrb[0].mxu0 %v620
    %v726 = vpop.f32.mrb[0].mxu0
    %v727 = vadd.f32 %v642, %v726
    %v728 = vpop.f32.mrb[0].mxu0
    %v729 = vpop.f32.mrb[0].mxu0
    %v730 = vpop.f32.mrb[0].mxu0
    %731 = vdwg.mxu0
    %732 = vst [vmem:[#allocation11] sm:$0xff] %v727
    // Predicated region
    $region42: #{classifier_forward.1} parent=1 // pred_check
      _
    $region43: #{classifier_forward.1} parent=1 // pred_check_branch
      %734 = sbr.rel (0) target = $region45
    $region44: #{classifier_forward.1} parent=1 // pred_region
      %s736 = ssub.s32 128, 128
      %737 = vsyncadd [#allocation4], %s736
      %s739 = sshll.u32 [#allocation11], 4
      %s740 = int_to_ptr.vmem [resolvable:$true] %s739
      %742 = dma.vmem_to_hbm [thread:$0]  %s740, 128, %s5, [#allocation4]
    $region45: #{classifier_forward.1} parent=1 // pred_fallthru
      _
    // Predicated region
    $region46: #{classifier_forward.1} parent=1 // pred_check
      _
    $region47: #{classifier_forward.1} parent=1 // pred_check_branch
      %744 = sbr.rel (0) target = $region49
    $region48: #{classifier_forward.1} parent=1 // pred_region
      %745 = dma.done [#allocation4], 128
    $region49: #{classifier_forward.1} parent=1 // pred_fallthru
      _
    %746 = vsyncpa [#allocation3], 1
    %747 = vsyncpa [#allocation6], 1
    %748 = vsyncpa [#allocation9], 1
    %749 = vsyncpa [#allocation4], 1

</llo_original>
